<compile_context>
chip_gen: v7x
topology: tpu7x:2x2x1
jax: 0.10.0
libtpu: 0.0.40
codegen_flags: <defaults>
</compile_context>

<pallas_src>
import jax
import jax.numpy as jnp
from jax import lax
from jax.experimental import pallas as pl
from jax.experimental.pallas import tpu as pltpu


def _round_up(n, m):
    return ((n + m - 1) // m) * m


def _softmax_last(h):
    # numerically stable softmax over the last (lane) axis == torch Softmax(dim=1)
    m = jnp.max(h, axis=-1, keepdims=True)
    e = jnp.exp(h - m)
    return e / jnp.sum(e, axis=-1, keepdims=True)   # exact divide (VPU has slack)


def _heads_and_store(x_f32, emb_bf16, wx_ref, bx_ref, wf_ref, bf_ref,
                     wy1_ref, wy2_ref, by_ref, out_ref):
    y = by_ref.shape[-1]

    # fcx + softmax  (bf16 matmul inputs, f32 accumulation, f32 softmax math)
    hx = jnp.dot(x_f32.astype(jnp.bfloat16), wx_ref[...],
                 preferred_element_type=jnp.float32) + bx_ref[...]
    lx = _softmax_last(hx)                                    # [TB, y]

    # fcf + softmax
    hf = jnp.dot(emb_bf16, wf_ref[...],
                 preferred_element_type=jnp.float32) + bf_ref[...]
    lf = _softmax_last(hf)                                    # [TB, y]

    # fcy(concat(lx, lf)) as an exact split-weight sum, then softmax
    hy = (jnp.dot(lx.astype(jnp.bfloat16), wy1_ref[...],
                  preferred_element_type=jnp.float32)
          + jnp.dot(lf.astype(jnp.bfloat16), wy2_ref[...],
                    preferred_element_type=jnp.float32)
          + by_ref[...])
    ly = _softmax_last(hy)                                    # [TB, y]

    # one lane-dense (128-wide) store; zero-fill the padded tail lanes
    tail = jnp.zeros((lx.shape[0], out_ref.shape[-1] - 3 * y), jnp.float32)
    out_ref[...] = jnp.concatenate([lx, lf, ly, tail], axis=-1)


def gather_fused_kernel(x_ref, idx_ref, table_ref, wx_ref, bx_ref, wf_ref,
                        bf_ref, wy1_ref, wy2_ref, by_ref, out_ref):
    TB = x_ref.shape[0]
    num_ver = table_ref.shape[0]
    # Exact embedding row gather via a one-hot matmul on the (idle) MXU.
    onehot = (lax.broadcasted_iota(jnp.int32, (TB, num_ver), 1)
              == idx_ref[...]).astype(jnp.bfloat16)           # [TB, num_ver]
    emb = jnp.dot(onehot, table_ref[...],
                  preferred_element_type=jnp.float32).astype(jnp.bfloat16)
    _heads_and_store(x_ref[...], emb, wx_ref, bx_ref, wf_ref, bf_ref,
                     wy1_ref, wy2_ref, by_ref, out_ref)


def pregathered_kernel(x_ref, emb_ref, wx_ref, bx_ref, wf_ref, bf_ref,
                       wy1_ref, wy2_ref, by_ref, out_ref):
    _heads_and_store(x_ref[...], emb_ref[...], wx_ref, bx_ref, wf_ref, bf_ref,
                     wy1_ref, wy2_ref, by_ref, out_ref)


def neural_net_supervised_forward(x, index, params, *, batch_tile=1024,
                                  fused_gather_max_rows=2048):
    """x: [B, x_shape_1] dense float32 (PyTorch calls x.toarray()),
    index: [B] int vertex ids. Returns (l_x_hid, l_emd_f, l_y)."""
    x = x.astype(jnp.float32)
    B, Kx = x.shape
    y = int(params["by"].shape[-1])
    table = params["embedding_bf16"]
    num_ver, Ke = table.shape

    # ---- batch tiling: big tiles, but keep >= 2 grid tiles when B allows ----
    TB = min(batch_tile, _round_up(B, 8))
    if _round_up(B, TB) == TB and B >= 16:
        TB = _round_up(-(-B // 2), 8)          # split so both v7x TCs get work
    Bp = _round_up(B, TB)
    num_tiles = Bp // TB

    OUT_W = _round_up(3 * y, 128)              # lane-dense output slab

    idx = index.astype(jnp.int32).reshape(B, 1)
    if Bp != B:
        x = jnp.pad(x, ((0, Bp - B), (0, 0)))
        idx = jnp.pad(idx, ((0, Bp - B), (0, 0)))   # padded rows hit row 0: harmless

    def act_spec(last):                       # pipelined activation tiles
        return pl.BlockSpec((TB, last), lambda i: (i, 0))

    def res_spec(shape):                      # VMEM-resident across grid steps
        return pl.BlockSpec(shape, lambda i: (0, 0))

    weights = (params["wx_bf16"], params["bx"], params["wf_bf16"], params["bf"],
               params["wy1_bf16"], params["wy2_bf16"], params["by"])
    weight_specs = [res_spec(w.shape) for w in weights]

    fuse_gather = num_ver <= fused_gather_max_rows
    if fuse_gather:
        kernel = gather_fused_kernel
        args = (x, idx, table) + weights
        in_specs = [act_spec(Kx), act_spec(1), res_spec(table.shape)] + weight_specs
        gather_flops = 2 * Bp * num_ver * Ke
        act_in_bytes = Bp * (Kx * 4 + 4) + int(table.size) * 2
        emb_tile_bytes = 0
    else:
        # TODO(synk): in-kernel DMA row gather for huge tables.
        emb = jnp.take(table, idx[:, 0], axis=0)      # [Bp, Ke] bf16 (exact values)
        kernel = pregathered_kernel
        args = (x, emb) + weights
        in_specs = [act_spec(Kx), act_spec(Ke)] + weight_specs
        gather_flops = 0
        act_in_bytes = Bp * (Kx * 4 + Ke * 2)
        emb_tile_bytes = TB * Ke * 2

    # VMEM budget: resident weights/table + double-buffered activation/output
    # tiles, 2x margin, clamped to 48 MiB (headroom on v7x's 64 MiB VMEM).
    weight_bytes = (sum(int(a.size) * a.dtype.itemsize for a in weights)
                    + int(table.size) * 2)
    tile_bytes = 2 * (TB * Kx * 4 + TB * 4 + emb_tile_bytes + TB * OUT_W * 4)
    vmem_limit = int(min(max(2 * (weight_bytes + tile_bytes), 8 << 20), 48 << 20))

    cost = pl.CostEstimate(
        flops=int(gather_flops + 2 * Bp * (Kx * y + Ke * y + 2 * y * y)),
        transcendentals=int(Bp * 3 * y),
        bytes_accessed=int(act_in_bytes + weight_bytes + Bp * OUT_W * 4),
    )

    packed = pl.pallas_call(
        kernel,
        out_shape=jax.ShapeDtypeStruct((Bp, OUT_W), jnp.float32),
        grid=(num_tiles,),
        in_specs=in_specs,
        out_specs=pl.BlockSpec((TB, OUT_W), lambda i: (i, 0)),
        compiler_params=pltpu.CompilerParams(
            dimension_semantics=("parallel",),   # v7x megacore split
            vmem_limit_bytes=vmem_limit,
        ),
        cost_estimate=cost,
    )(*args)

    lx = packed[:B, :y]
    lf = packed[:B, y:2 * y]
    ly = packed[:B, 2 * y:3 * y]
    return lx, lf, ly


def _reference_forward(x, index, params):
    """Pure-JAX reference of the same math, with matmul inputs quantized to
    bf16 exactly like the kernel so the comparison is tight."""
    y = params["by"].shape[-1]
    q = lambda a: a.astype(jnp.bfloat16).astype(jnp.float32)

    emb = jnp.take(params["embedding"], index, axis=0)
    lx = jax.nn.softmax(q(x) @ q(params["wx"]) + params["bx"], axis=-1)
    lf = jax.nn.softmax(q(emb) @ q(params["wf"]) + params["bf"], axis=-1)
    hy = (q(lx) @ q(params["wy"][:y]) + q(lf) @ q(params["wy"][y:])
          + params["by"])
    ly = jax.nn.softmax(hy, axis=-1)
    return lx, lf, ly


def init_params(key, x_shape_1, y_shape, embedding_size, num_ver):
    ks = jax.random.split(key, 7)

    def linear(kw, kb, fan_in, fan_out):
        bound = 1.0 / jnp.sqrt(fan_in)
        # stored as [in, out] so the kernel computes x @ W (== x @ W_torch.T)
        w = jax.random.uniform(kw, (fan_in, fan_out), jnp.float32, -bound, bound)
        b = jax.random.uniform(kb, (1, fan_out), jnp.float32, -bound, bound)
        return w, b

    embedding = jax.random.normal(ks[0], (num_ver, embedding_size), jnp.float32)
    wx, bx = linear(ks[1], ks[2], x_shape_1, y_shape)
    wf, bf = linear(ks[3], ks[4], embedding_size, y_shape)
    wy, by = linear(ks[5], ks[6], 2 * y_shape, y_shape)

    return {
        # kernel params: matmul weights / embedding table in bf16, biases in f32
        "embedding_bf16": embedding.astype(jnp.bfloat16),
        "wx_bf16": wx.astype(jnp.bfloat16), "bx": bx,
        "wf_bf16": wf.astype(jnp.bfloat16), "bf": bf,
        "wy1_bf16": wy[:y_shape].astype(jnp.bfloat16),
        "wy2_bf16": wy[y_shape:].astype(jnp.bfloat16),
        "by": by,
        # f32 originals for the pure-JAX reference
        "embedding": embedding, "wx": wx, "wf": wf, "wy": wy,
    }


if __name__ == "__main__":
    B = 8
    x_shape_1 = 32
    y_shape = 16
    embedding_size = 24
    num_ver = 100

    key = jax.random.PRNGKey(0)
    k_par, k_x, k_idx = jax.random.split(key, 3)

    params = init_params(k_par, x_shape_1, y_shape, embedding_size, num_ver)
    x = jax.random.normal(k_x, (B, x_shape_1), jnp.float32)
    index = jax.random.randint(k_idx, (B,), 0, num_ver, dtype=jnp.int32)

    lx, lf, ly = neural_net_supervised_forward(x, index, params)
    jax.block_until_ready((lx, lf, ly))

    # tight check against a pure-JAX reference of the same bf16-quantized math
    rlx, rlf, rly = _reference_forward(x, index, params)
    assert jnp.allclose(lx, rlx, atol=3e-3), float(jnp.max(jnp.abs(lx - rlx)))
    assert jnp.allclose(lf, rlf, atol=3e-3), float(jnp.max(jnp.abs(lf - rlf)))
    assert jnp.allclose(ly, rly, atol=3e-3), float(jnp.max(jnp.abs(ly - rly)))
    # exact softmax divide: rows sum to 1
    assert jnp.allclose(jnp.sum(lx, axis=-1), 1.0, atol=1e-3)
    assert jnp.allclose(jnp.sum(ly, axis=-1), 1.0, atol=1e-3)

    print("KERNEL_OK")
</pallas_src>

<mosaic_0001>
module attributes {stable_mosaic.version = 11 : i64} {
  func.func @gather_fused_kernel(%arg0: i32, %arg1: memref<8x32xf32, #tpu.memory_space<vmem>>, %arg2: memref<8x1xi32, #tpu.memory_space<vmem>>, %arg3: memref<100x24xbf16, #tpu.memory_space<vmem>>, %arg4: memref<32x16xbf16, #tpu.memory_space<vmem>>, %arg5: memref<1x16xf32, #tpu.memory_space<vmem>>, %arg6: memref<24x16xbf16, #tpu.memory_space<vmem>>, %arg7: memref<1x16xf32, #tpu.memory_space<vmem>>, %arg8: memref<16x16xbf16, #tpu.memory_space<vmem>>, %arg9: memref<16x16xbf16, #tpu.memory_space<vmem>>, %arg10: memref<1x16xf32, #tpu.memory_space<vmem>>, %arg11: memref<8x128xf32, #tpu.memory_space<vmem>>) attributes {dimension_semantics = [#tpu.dimension_semantics<parallel>], iteration_bounds = array<i64: 1>, scalar_prefetch = 0 : i64, scratch_operands = 0 : i64, tpu.core_type = #tpu.core_type<tc>, window_params = [{transform_indices = @transform_0, window_bounds = array<i64: 8, 32>}, {transform_indices = @transform_1, window_bounds = array<i64: 8, 1>}, {pipeline_mode = #tpu.pipeline_mode<synchronous>, transform_indices = @transform_2, window_bounds = array<i64: 100, 24>}, {pipeline_mode = #tpu.pipeline_mode<synchronous>, transform_indices = @transform_3, window_bounds = array<i64: 32, 16>}, {pipeline_mode = #tpu.pipeline_mode<synchronous>, transform_indices = @transform_4, window_bounds = array<i64: 1, 16>}, {pipeline_mode = #tpu.pipeline_mode<synchronous>, transform_indices = @transform_5, window_bounds = array<i64: 24, 16>}, {pipeline_mode = #tpu.pipeline_mode<synchronous>, transform_indices = @transform_6, window_bounds = array<i64: 1, 16>}, {pipeline_mode = #tpu.pipeline_mode<synchronous>, transform_indices = @transform_7, window_bounds = array<i64: 16, 16>}, {pipeline_mode = #tpu.pipeline_mode<synchronous>, transform_indices = @transform_8, window_bounds = array<i64: 16, 16>}, {pipeline_mode = #tpu.pipeline_mode<synchronous>, transform_indices = @transform_9, window_bounds = array<i64: 1, 16>}, {transform_indices = @transform_10, window_bounds = array<i64: 8, 128>}]} {
    %0 = tpu.iota {dimensions = array<i32: 1>} : vector<8x100xi32>
    %c0 = arith.constant 0 : index
    %c0_0 = arith.constant 0 : index
    %1 = vector.load %arg2[%c0, %c0_0] : memref<8x1xi32, #tpu.memory_space<vmem>>, vector<8x1xi32>
    %2 = vector.broadcast %1 : vector<8x1xi32> to vector<8x100xi32>
    %3 = arith.cmpi eq, %0, %2 : vector<8x100xi32>
    %4 = arith.extui %3 : vector<8x100xi1> to vector<8x100xi32>
    %5 = arith.sitofp %4 : vector<8x100xi32> to vector<8x100xf32>
    %6 = arith.truncf %5 : vector<8x100xf32> to vector<8x100xbf16>
    %c0_1 = arith.constant 0 : index
    %c0_2 = arith.constant 0 : index
    %7 = vector.load %arg3[%c0_1, %c0_2] : memref<100x24xbf16, #tpu.memory_space<vmem>>, vector<100x24xbf16>
    %cst = arith.constant dense<0.000000e+00> : vector<8x24xf32>
    %8 = tpu.matmul %6, %7, %cst {dimension_numbers = #tpu.dot_dimension_numbers<[1], [0], [0], [1], [0, 0, 1, 1], [], []>} : vector<8x100xbf16>, vector<100x24xbf16>, vector<8x24xf32> -> vector<8x24xf32>
    %9 = arith.truncf %8 : vector<8x24xf32> to vector<8x24xbf16>
    %c0_3 = arith.constant 0 : index
    %c0_4 = arith.constant 0 : index
    %10 = vector.load %arg1[%c0_3, %c0_4] : memref<8x32xf32, #tpu.memory_space<vmem>>, vector<8x32xf32>
    %11 = arith.truncf %10 : vector<8x32xf32> to vector<8x32xbf16>
    %c0_5 = arith.constant 0 : index
    %c0_6 = arith.constant 0 : index
    %12 = vector.load %arg4[%c0_5, %c0_6] : memref<32x16xbf16, #tpu.memory_space<vmem>>, vector<32x16xbf16>
    %cst_7 = arith.constant dense<0.000000e+00> : vector<8x16xf32>
    %13 = tpu.matmul %11, %12, %cst_7 {dimension_numbers = #tpu.dot_dimension_numbers<[1], [0], [0], [1], [0, 0, 1, 1], [], []>} : vector<8x32xbf16>, vector<32x16xbf16>, vector<8x16xf32> -> vector<8x16xf32>
    %c0_8 = arith.constant 0 : index
    %c0_9 = arith.constant 0 : index
    %14 = vector.load %arg5[%c0_8, %c0_9] : memref<1x16xf32, #tpu.memory_space<vmem>>, vector<1x16xf32>
    %15 = vector.broadcast %14 : vector<1x16xf32> to vector<8x16xf32>
    %16 = arith.addf %13, %15 : vector<8x16xf32>
    %cst_10 = arith.constant dense<0xFF800000> : vector<8xf32>
    %17 = vector.multi_reduction <maximumf>, %16, %cst_10 [1] : vector<8x16xf32> to vector<8xf32>
    %18 = vector.shape_cast %17 : vector<8xf32> to vector<8x1xf32>
    %19 = vector.broadcast %18 : vector<8x1xf32> to vector<8x16xf32>
    %20 = arith.subf %16, %19 : vector<8x16xf32>
    %21 = math.exp %20 : vector<8x16xf32>
    %cst_11 = arith.constant dense<0.000000e+00> : vector<8xf32>
    %22 = vector.multi_reduction <add>, %21, %cst_11 [1] : vector<8x16xf32> to vector<8xf32>
    %23 = vector.shape_cast %22 : vector<8xf32> to vector<8x1xf32>
    %24 = vector.broadcast %23 : vector<8x1xf32> to vector<8x16xf32>
    %25 = arith.divf %21, %24 : vector<8x16xf32>
    %c0_12 = arith.constant 0 : index
    %c0_13 = arith.constant 0 : index
    %26 = vector.load %arg6[%c0_12, %c0_13] : memref<24x16xbf16, #tpu.memory_space<vmem>>, vector<24x16xbf16>
    %cst_14 = arith.constant dense<0.000000e+00> : vector<8x16xf32>
    %27 = tpu.matmul %9, %26, %cst_14 {dimension_numbers = #tpu.dot_dimension_numbers<[1], [0], [0], [1], [0, 0, 1, 1], [], []>} : vector<8x24xbf16>, vector<24x16xbf16>, vector<8x16xf32> -> vector<8x16xf32>
    %c0_15 = arith.constant 0 : index
    %c0_16 = arith.constant 0 : index
    %28 = vector.load %arg7[%c0_15, %c0_16] : memref<1x16xf32, #tpu.memory_space<vmem>>, vector<1x16xf32>
    %29 = vector.broadcast %28 : vector<1x16xf32> to vector<8x16xf32>
    %30 = arith.addf %27, %29 : vector<8x16xf32>
    %cst_17 = arith.constant dense<0xFF800000> : vector<8xf32>
    %31 = vector.multi_reduction <maximumf>, %30, %cst_17 [1] : vector<8x16xf32> to vector<8xf32>
    %32 = vector.shape_cast %31 : vector<8xf32> to vector<8x1xf32>
    %33 = vector.broadcast %32 : vector<8x1xf32> to vector<8x16xf32>
    %34 = arith.subf %30, %33 : vector<8x16xf32>
    %35 = math.exp %34 : vector<8x16xf32>
    %cst_18 = arith.constant dense<0.000000e+00> : vector<8xf32>
    %36 = vector.multi_reduction <add>, %35, %cst_18 [1] : vector<8x16xf32> to vector<8xf32>
    %37 = vector.shape_cast %36 : vector<8xf32> to vector<8x1xf32>
    %38 = vector.broadcast %37 : vector<8x1xf32> to vector<8x16xf32>
    %39 = arith.divf %35, %38 : vector<8x16xf32>
    %40 = arith.truncf %25 : vector<8x16xf32> to vector<8x16xbf16>
    %c0_19 = arith.constant 0 : index
    %c0_20 = arith.constant 0 : index
    %41 = vector.load %arg8[%c0_19, %c0_20] : memref<16x16xbf16, #tpu.memory_space<vmem>>, vector<16x16xbf16>
    %cst_21 = arith.constant dense<0.000000e+00> : vector<8x16xf32>
    %42 = tpu.matmul %40, %41, %cst_21 {dimension_numbers = #tpu.dot_dimension_numbers<[1], [0], [0], [1], [0, 0, 1, 1], [], []>} : vector<8x16xbf16>, vector<16x16xbf16>, vector<8x16xf32> -> vector<8x16xf32>
    %43 = arith.truncf %39 : vector<8x16xf32> to vector<8x16xbf16>
    %c0_22 = arith.constant 0 : index
    %c0_23 = arith.constant 0 : index
    %44 = vector.load %arg9[%c0_22, %c0_23] : memref<16x16xbf16, #tpu.memory_space<vmem>>, vector<16x16xbf16>
    %cst_24 = arith.constant dense<0.000000e+00> : vector<8x16xf32>
    %45 = tpu.matmul %43, %44, %cst_24 {dimension_numbers = #tpu.dot_dimension_numbers<[1], [0], [0], [1], [0, 0, 1, 1], [], []>} : vector<8x16xbf16>, vector<16x16xbf16>, vector<8x16xf32> -> vector<8x16xf32>
    %46 = arith.addf %42, %45 : vector<8x16xf32>
    %c0_25 = arith.constant 0 : index
    %c0_26 = arith.constant 0 : index
    %47 = vector.load %arg10[%c0_25, %c0_26] : memref<1x16xf32, #tpu.memory_space<vmem>>, vector<1x16xf32>
    %48 = vector.broadcast %47 : vector<1x16xf32> to vector<8x16xf32>
    %49 = arith.addf %46, %48 : vector<8x16xf32>
    %cst_27 = arith.constant dense<0xFF800000> : vector<8xf32>
    %50 = vector.multi_reduction <maximumf>, %49, %cst_27 [1] : vector<8x16xf32> to vector<8xf32>
    %51 = vector.shape_cast %50 : vector<8xf32> to vector<8x1xf32>
    %52 = vector.broadcast %51 : vector<8x1xf32> to vector<8x16xf32>
    %53 = arith.subf %49, %52 : vector<8x16xf32>
    %54 = math.exp %53 : vector<8x16xf32>
    %cst_28 = arith.constant dense<0.000000e+00> : vector<8xf32>
    %55 = vector.multi_reduction <add>, %54, %cst_28 [1] : vector<8x16xf32> to vector<8xf32>
    %56 = vector.shape_cast %55 : vector<8xf32> to vector<8x1xf32>
    %57 = vector.broadcast %56 : vector<8x1xf32> to vector<8x16xf32>
    %58 = arith.divf %54, %57 : vector<8x16xf32>
    %cst_29 = arith.constant 0.000000e+00 : f32
    %59 = vector.broadcast %cst_29 : f32 to vector<8x80xf32>
    %60 = tpu.concatenate %25, %39, %58, %59 in 1 : vector<8x16xf32>, vector<8x16xf32>, vector<8x16xf32>, vector<8x80xf32> -> vector<8x128xf32>
    %c0_30 = arith.constant 0 : index
    %c0_31 = arith.constant 0 : index
    %61 = vector.load %arg11[%c0_30, %c0_31] : memref<8x128xf32, #tpu.memory_space<vmem>>, vector<8x128xf32>
    tpu.vector_store %arg11[%c0_30, %c0_31], %60 {strides = array<i32>} : memref<8x128xf32, #tpu.memory_space<vmem>>, vector<8x128xf32>,
    return
  }
  func.func @transform_0(%arg0: i32) -> (i32, i32) {
    %c0_i32 = arith.constant 0 : i32
    %c0_i32_0 = arith.constant 0 : i32
    return %arg0, %c0_i32 : i32, i32
  }
  func.func @transform_1(%arg0: i32) -> (i32, i32) {
    %c0_i32 = arith.constant 0 : i32
    %c0_i32_0 = arith.constant 0 : i32
    return %arg0, %c0_i32 : i32, i32
  }
  func.func @transform_2(%arg0: i32) -> (i32, i32) {
    %c0_i32 = arith.constant 0 : i32
    %c0_i32_0 = arith.constant 0 : i32
    %c0_i32_1 = arith.constant 0 : i32
    return %c0_i32, %c0_i32_0 : i32, i32
  }
  func.func @transform_3(%arg0: i32) -> (i32, i32) {
    %c0_i32 = arith.constant 0 : i32
    %c0_i32_0 = arith.constant 0 : i32
    %c0_i32_1 = arith.constant 0 : i32
    return %c0_i32, %c0_i32_0 : i32, i32
  }
  func.func @transform_4(%arg0: i32) -> (i32, i32) {
    %c0_i32 = arith.constant 0 : i32
    %c0_i32_0 = arith.constant 0 : i32
    %c0_i32_1 = arith.constant 0 : i32
    return %c0_i32, %c0_i32_0 : i32, i32
  }
  func.func @transform_5(%arg0: i32) -> (i32, i32) {
    %c0_i32 = arith.constant 0 : i32
    %c0_i32_0 = arith.constant 0 : i32
    %c0_i32_1 = arith.constant 0 : i32
    return %c0_i32, %c0_i32_0 : i32, i32
  }
  func.func @transform_6(%arg0: i32) -> (i32, i32) {
    %c0_i32 = arith.constant 0 : i32
    %c0_i32_0 = arith.constant 0 : i32
    %c0_i32_1 = arith.constant 0 : i32
    return %c0_i32, %c0_i32_0 : i32, i32
  }
  func.func @transform_7(%arg0: i32) -> (i32, i32) {
    %c0_i32 = arith.constant 0 : i32
    %c0_i32_0 = arith.constant 0 : i32
    %c0_i32_1 = arith.constant 0 : i32
    return %c0_i32, %c0_i32_0 : i32, i32
  }
  func.func @transform_8(%arg0: i32) -> (i32, i32) {
    %c0_i32 = arith.constant 0 : i32
    %c0_i32_0 = arith.constant 0 : i32
    %c0_i32_1 = arith.constant 0 : i32
    return %c0_i32, %c0_i32_0 : i32, i32
  }
  func.func @transform_9(%arg0: i32) -> (i32, i32) {
    %c0_i32 = arith.constant 0 : i32
    %c0_i32_0 = arith.constant 0 : i32
    %c0_i32_1 = arith.constant 0 : i32
    return %c0_i32, %c0_i32_0 : i32, i32
  }
  func.func @transform_10(%arg0: i32) -> (i32, i32) {
    %c0_i32 = arith.constant 0 : i32
    %c0_i32_0 = arith.constant 0 : i32
    return %arg0, %c0_i32 : i32, i32
  }
}

</mosaic_0001>

<llo_original>
// kernel: tpu_custom_call.1
$region0: #{tpu_custom_call.1}
  #allocation0 [shape = 'u32[]', space=smem, size = 0x4, offset = 0x4, fixed_abs, tag = 'smem constant byte address 0x4 - core index']
  #allocation1 [shape = 'u32[144,128]{1,0:T(1,128)}', space=vmem, size = 0x12000, scoped, tag = 'internal scratch']
  %s0 = inlined_call_operand.vmem [shape: f32[8,32], index: 0, kind: input, shape index: {}]
  %s1 = inlined_call_operand.vmem [shape: s32[8,1], index: 1, kind: input, shape index: {}]
  %s2 = inlined_call_operand.vmem [shape: bf16[100,24], index: 2, kind: input, shape index: {}]
  %s3 = inlined_call_operand.vmem [shape: bf16[32,16], index: 3, kind: input, shape index: {}]
  %s4 = inlined_call_operand.vmem [shape: f32[1,16], index: 4, kind: input, shape index: {}]
  %s5 = inlined_call_operand.vmem [shape: bf16[24,16], index: 5, kind: input, shape index: {}]
  %s6 = inlined_call_operand.vmem [shape: f32[1,16], index: 6, kind: input, shape index: {}]
  %s7 = inlined_call_operand.vmem [shape: bf16[16,16], index: 7, kind: input, shape index: {}]
  %s8 = inlined_call_operand.vmem [shape: bf16[16,16], index: 8, kind: input, shape index: {}]
  %s9 = inlined_call_operand.vmem [shape: f32[1,16], index: 9, kind: input, shape index: {}]
  %s10 = inlined_call_operand.hbm [shape: f32[8,128], index: 10, kind: output, shape index: {}]
  %s11 = sld [smem:[#allocation0]]
  $region50: #{tpu_custom_call.1} parent=0
    _
  %s13 = ssub.s32 1, %s11
  %s14 = scalar_select 0, %s13, %s11
  $region1: #{tpu_custom_call.1} parent=0
    #allocation2 [shape = 'u8[4096]{0}', space=vmem, size = 0x1000, scoped, tag = 'output window, operand 0, single buffered']
    #allocation3 [shape = 's32[1]{0}', space=sflag, size = 0x4, scoped, tag = 'scoped memory for tpu_custom_call.1']
    %15 = vsyncpa [#allocation3], 0
    // Predicated region
    $region2: #{tpu_custom_call.1} parent=1 // pred_check
      _
    $region3: #{tpu_custom_call.1} parent=1 // pred_check_branch
      %17 = sbr.rel (0) target = $region5
    $region4: #{tpu_custom_call.1} parent=1 // pred_region
      _
    $region5: #{tpu_custom_call.1} parent=1 // pred_fallthru
      _
    // Predicated region
    $region6: #{tpu_custom_call.1} parent=1 // pred_check
      _
    $region7: #{tpu_custom_call.1} parent=1 // pred_check_branch
      %19 = sbr.rel (0) target = $region9
    $region8: #{tpu_custom_call.1} parent=1 // pred_region
      _
    $region9: #{tpu_custom_call.1} parent=1 // pred_fallthru
      _
    // Predicated region
    $region10: #{tpu_custom_call.1} parent=1 // pred_check
      _
    $region11: #{tpu_custom_call.1} parent=1 // pred_check_branch
      %21 = sbr.rel (0) target = $region13
    $region12: #{tpu_custom_call.1} parent=1 // pred_region
      _
    $region13: #{tpu_custom_call.1} parent=1 // pred_fallthru
      _
    // Predicated region
    $region14: #{tpu_custom_call.1} parent=1 // pred_check
      _
    $region15: #{tpu_custom_call.1} parent=1 // pred_check_branch
      %23 = sbr.rel (0) target = $region17
    $region16: #{tpu_custom_call.1} parent=1 // pred_region
      _
    $region17: #{tpu_custom_call.1} parent=1 // pred_fallthru
      _
    // Predicated region
    $region18: #{tpu_custom_call.1} parent=1 // pred_check
      _
    $region19: #{tpu_custom_call.1} parent=1 // pred_check_branch
      %25 = sbr.rel (0) target = $region21
    $region20: #{tpu_custom_call.1} parent=1 // pred_region
      _
    $region21: #{tpu_custom_call.1} parent=1 // pred_fallthru
      _
    // Predicated region
    $region22: #{tpu_custom_call.1} parent=1 // pred_check
      _
    $region23: #{tpu_custom_call.1} parent=1 // pred_check_branch
      %27 = sbr.rel (0) target = $region25
    $region24: #{tpu_custom_call.1} parent=1 // pred_region
      _
    $region25: #{tpu_custom_call.1} parent=1 // pred_fallthru
      _
    // Predicated region
    $region26: #{tpu_custom_call.1} parent=1 // pred_check
      _
    $region27: #{tpu_custom_call.1} parent=1 // pred_check_branch
      %29 = sbr.rel (0) target = $region29
    $region28: #{tpu_custom_call.1} parent=1 // pred_region
      _
    $region29: #{tpu_custom_call.1} parent=1 // pred_fallthru
      _
    // Predicated region
    $region30: #{tpu_custom_call.1} parent=1 // pred_check
      _
    $region31: #{tpu_custom_call.1} parent=1 // pred_check_branch
      %31 = sbr.rel (0) target = $region33
    $region32: #{tpu_custom_call.1} parent=1 // pred_region
      _
    $region33: #{tpu_custom_call.1} parent=1 // pred_fallthru
      _
    // Predicated region
    $region34: #{tpu_custom_call.1} parent=1 // pred_check
      _
    $region35: #{tpu_custom_call.1} parent=1 // pred_check_branch
      %33 = sbr.rel (0) target = $region37
    $region36: #{tpu_custom_call.1} parent=1 // pred_region
      _
    $region37: #{tpu_custom_call.1} parent=1 // pred_fallthru
      _
    // Predicated region
    $region38: #{tpu_custom_call.1} parent=1 // pred_check
      _
    $region39: #{tpu_custom_call.1} parent=1 // pred_check_branch
      %35 = sbr.rel (0) target = $region41
    $region40: #{tpu_custom_call.1} parent=1 // pred_region
      _
    $region41: #{tpu_custom_call.1} parent=1 // pred_fallthru
      _
    %v37 = vlaneseq
    %v38 = vand.u32 %v37, 127
    %v39 = vld [vmem:[%s1] sm:$0xff]
    %40 = vset.pattern.permute.xlu0 0
    %41 = vperm.xlu0 %40, %v39
    %v42 = vpop.permute.xlu0 %41
    %vm43 = vcmp.eq.s32.totalorder %v38, %v42
    %v44 = vsel %vm43, 1, 0
    %v45 = vcvt.s32.f32 %v44
    %v46 = vpack.c.bf16 %v45, %v45
    %v47 = vld [vmem:[%s2] sm:$0xf]
    %v48 = vld [vmem:[%s2 + $0x4] sm:$0xf]
    %v49 = vld [vmem:[%s2 + $0x8] sm:$0xf]
    %v50 = vld [vmem:[%s2 + $0xc] sm:$0xf]
    %v51 = vld [vmem:[%s2 + $0x10] sm:$0xf]
    %v52 = vld [vmem:[%s2 + $0x14] sm:$0xf]
    %v53 = vld [vmem:[%s2 + $0x18] sm:$0xf]
    %v54 = vld [vmem:[%s2 + $0x1c] sm:$0xf]
    %v55 = vld [vmem:[%s2 + $0x20] sm:$0xf]
    %v56 = vld [vmem:[%s2 + $0x24] sm:$0xf]
    %v57 = vld [vmem:[%s2 + $0x28] sm:$0xf]
    %v58 = vld [vmem:[%s2 + $0x2c] sm:$0xf]
    %v59 = vld [vmem:[%s2 + $0x30] sm:$0x3]
    %v73 = vunpack.c.l.b16 %v47
    %v74 = vunpack.c.l.b16 %v48
    %v75 = vunpack.c.l.b16 %v49
    %v76 = vunpack.c.l.b16 %v50
    %v77 = vunpack.c.l.b16 %v51
    %v78 = vunpack.c.l.b16 %v52
    %v79 = vunpack.c.l.b16 %v53
    %v80 = vunpack.c.l.b16 %v54
    %v81 = vunpack.c.l.b16 %v55
    %v82 = vunpack.c.l.b16 %v56
    %v83 = vunpack.c.l.b16 %v57
    %v84 = vunpack.c.l.b16 %v58
    %v85 = vunpack.c.l.b16 %v59
    %v86 = vpack.c.b16 %v74, %v73
    %v87 = vpack.c.b16 %v76, %v75
    %v88 = vpack.c.b16 %v78, %v77
    %v89 = vpack.c.b16 %v80, %v79
    %v90 = vpack.c.b16 %v82, %v81
    %v91 = vpack.c.b16 %v84, %v83
    %v92 = vpack.c.b16 %v85, %v85
    %vm99 = vcmask 818176
    %v101 = vsel %vm99, %v46, 0
    %vm103 = vcmask 1041408
    %v105 = vsel %vm103, %v92, 0
    %107 = vmatprep.subr.bf16.mxu0 0
    %108 = vmatpush1.bf16.msra.mxu0 %v86
    %109 = vmatprep.subr.bf16.mxu0 0
    %110 = vmatpush1.bf16.msra.mxu0 %v87
    %111 = vmatprep.subr.bf16.mxu0 0
    %112 = vmatpush1.bf16.msra.mxu0 %v88
    %113 = vmatprep.subr.bf16.mxu0 0
    %114 = vmatpush1.bf16.msra.mxu0 %v89
    %115 = vmatprep.subr.bf16.mxu0 0
    %116 = vmatpush1.bf16.msra.mxu0 %v90
    %117 = vmatprep.subr.bf16.mxu0 0
    %118 = vmatpush1.bf16.msra.mxu0 %v91
    %119 = vmatprep.subr.bf16.mxu0 0
    %120 = vmatpush1.bf16.msra.mxu0 %v105
    %121 = vmatprep.subr.bf16.mxu0 0
    %122 = vmatpush1.bf16.msra.mxu0 0
    %123 = vmatprep.subr.bf16.mxu0 0
    %124 = vmatpush1.bf16.msra.mxu0 0
    %125 = vmatprep.subr.bf16.mxu0 0
    %126 = vmatpush1.bf16.msra.mxu0 0
    %127 = vmatprep.subr.bf16.mxu0 0
    %128 = vmatpush1.bf16.msra.mxu0 0
    %129 = vmatprep.subr.bf16.mxu0 0
    %130 = vmatpush1.bf16.msra.mxu0 0
    %131 = vmatprep.subr.bf16.mxu0 0
    %132 = vmatpush1.bf16.msra.mxu0 0
    %133 = vmatprep.subr.bf16.mxu0 0
    %134 = vmatpush1.bf16.msra.mxu0 0
    %135 = vmatprep.subr.bf16.mxu0 0
    %136 = vmatpush1.bf16.msra.mxu0 0
    %137 = vmatprep.subr.bf16.mxu0 0
    %138 = vmatpush1.bf16.msra.mxu0 0
    %139 = vmatprep.mubr.bf16.mxu0 0
    %140 = vmatmul.mubr.bf16.gmra.mrb[0].mxu0 %v101
    %v141 = vpop.f32.mrb[0].mxu0
    %v142 = vadd.f32 0.0, %v141
    %v143 = vpop.f32.mrb[0].mxu0
    %v144 = vpop.f32.mrb[0].mxu0
    %v145 = vpop.f32.mrb[0].mxu0
    %146 = vdwg.mxu0
    %v147 = vpack.c.bf16 %v142, %v142
    %v148 = vld [vmem:[%s0] sm:$0xff]
    %v149 = vpack.c.bf16 %v148, %v148
    %v150 = vld [vmem:[%s3] sm:$0xf]
    %v151 = vld [vmem:[%s3 + $0x4] sm:$0xf]
    %v152 = vld [vmem:[%s3 + $0x8] sm:$0xf]
    %v153 = vld [vmem:[%s3 + $0xc] sm:$0xf]
    %v154 = vld [vmem:[%s4] sm:$0x1]
    %v156 = vlaneseq
    %v157 = vshrl.u32 %v156, 7
    %v158 = vsub.s32 0, %v157
    %v159 = vrot.slane %v154, %v158
    %v165 = vunpack.c.l.b16 %v150
    %v166 = vunpack.c.l.b16 %v151
    %v167 = vunpack.c.l.b16 %v152
    %v168 = vunpack.c.l.b16 %v153
    %v169 = vpack.c.b16 %v166, %v165
    %v170 = vpack.c.b16 %v168, %v167
    %vm173 = vcmask 261120
    %v175 = vsel %vm173, %v149, 0
    %177 = vmatprep.subr.bf16.mxu0 0
    %178 = vmatpush1.bf16.msra.mxu0 %v169
    %179 = vmatprep.subr.bf16.mxu0 0
    %180 = vmatpush1.bf16.msra.mxu0 %v170
    %181 = vmatprep.subr.bf16.mxu0 0
    %182 = vmatpush1.bf16.msra.mxu0 0
    %183 = vmatprep.subr.bf16.mxu0 0
    %184 = vmatpush1.bf16.msra.mxu0 0
    %185 = vmatprep.subr.bf16.mxu0 0
    %186 = vmatpush1.bf16.msra.mxu0 0
    %187 = vmatprep.subr.bf16.mxu0 0
    %188 = vmatpush1.bf16.msra.mxu0 0
    %189 = vmatprep.subr.bf16.mxu0 0
    %190 = vmatpush1.bf16.msra.mxu0 0
    %191 = vmatprep.subr.bf16.mxu0 0
    %192 = vmatpush1.bf16.msra.mxu0 0
    %193 = vmatprep.subr.bf16.mxu0 0
    %194 = vmatpush1.bf16.msra.mxu0 0
    %195 = vmatprep.subr.bf16.mxu0 0
    %196 = vmatpush1.bf16.msra.mxu0 0
    %197 = vmatprep.subr.bf16.mxu0 0
    %198 = vmatpush1.bf16.msra.mxu0 0
    %199 = vmatprep.subr.bf16.mxu0 0
    %200 = vmatpush1.bf16.msra.mxu0 0
    %201 = vmatprep.subr.bf16.mxu0 0
    %202 = vmatpush1.bf16.msra.mxu0 0
    %203 = vmatprep.subr.bf16.mxu0 0
    %204 = vmatpush1.bf16.msra.mxu0 0
    %205 = vmatprep.subr.bf16.mxu0 0
    %206 = vmatpush1.bf16.msra.mxu0 0
    %207 = vmatprep.subr.bf16.mxu0 0
    %208 = vmatpush1.bf16.msra.mxu0 0
    %209 = vmatprep.mubr.bf16.mxu0 0
    %210 = vmatmul.mubr.bf16.gmra.mrb[0].mxu0 %v175
    %v211 = vpop.f32.mrb[0].mxu0
    %v212 = vadd.f32 %v159, %v211
    %v213 = vpop.f32.mrb[0].mxu0
    %v214 = vpop.f32.mrb[0].mxu0
    %v215 = vpop.f32.mrb[0].mxu0
    %216 = vdwg.mxu0
    %vm217 = vcmask 130048
    %v218 = vsel %vm217, %v212, -inf
    %219 = vmax.xlane.f32.xlu0 %v218
    %v220 = vpop.xlane.xlu0 %219
    %v221 = vsub.f32 %v212, %v220
    %v222 = vmul.f32 %v221, 1.442695
    %v223 = vpow.pop %v222
    %v224 = vsel %vm217, %v223, 0.0
    %225 = vadd.xlane.f32.xlu0 %v224
    %v226 = vpop.xlane.xlu0 %225
    %v227 = vrcp.pop %v226
    %v228 = vmul.f32 %v223, %v227
    %v229 = vld [vmem:[%s5] sm:$0xf]
    %v230 = vld [vmem:[%s5 + $0x4] sm:$0xf]
    %v231 = vld [vmem:[%s5 + $0x8] sm:$0xf]
    %v232 = vld [vmem:[%s6] sm:$0x1]
    %v234 = vlaneseq
    %v235 = vshrl.u32 %v234, 7
    %v236 = vsub.s32 0, %v235
    %v237 = vrot.slane %v232, %v236
    %v242 = vunpack.c.l.b16 %v229
    %v243 = vunpack.c.l.b16 %v230
    %v244 = vunpack.c.l.b16 %v231
    %v245 = vpack.c.b16 %v243, %v242
    %v246 = vpack.c.b16 %v244, %v244
    %vm248 = vcmask 195584
    %v250 = vsel %vm248, %v147, 0
    %vm252 = vcmask 1043456
    %v254 = vsel %vm252, %v246, 0
    %256 = vmatprep.subr.bf16.mxu0 0
    %257 = vmatpush1.bf16.msra.mxu0 %v245
    %258 = vmatprep.subr.bf16.mxu0 0
    %259 = vmatpush1.bf16.msra.mxu0 %v254
    %260 = vmatprep.subr.bf16.mxu0 0
    %261 = vmatpush1.bf16.msra.mxu0 0
    %262 = vmatprep.subr.bf16.mxu0 0
    %263 = vmatpush1.bf16.msra.mxu0 0
    %264 = vmatprep.subr.bf16.mxu0 0
    %265 = vmatpush1.bf16.msra.mxu0 0
    %266 = vmatprep.subr.bf16.mxu0 0
    %267 = vmatpush1.bf16.msra.mxu0 0
    %268 = vmatprep.subr.bf16.mxu0 0
    %269 = vmatpush1.bf16.msra.mxu0 0
    %270 = vmatprep.subr.bf16.mxu0 0
    %271 = vmatpush1.bf16.msra.mxu0 0
    %272 = vmatprep.subr.bf16.mxu0 0
    %273 = vmatpush1.bf16.msra.mxu0 0
    %274 = vmatprep.subr.bf16.mxu0 0
    %275 = vmatpush1.bf16.msra.mxu0 0
    %276 = vmatprep.subr.bf16.mxu0 0
    %277 = vmatpush1.bf16.msra.mxu0 0
    %278 = vmatprep.subr.bf16.mxu0 0
    %279 = vmatpush1.bf16.msra.mxu0 0
    %280 = vmatprep.subr.bf16.mxu0 0
    %281 = vmatpush1.bf16.msra.mxu0 0
    %282 = vmatprep.subr.bf16.mxu0 0
    %283 = vmatpush1.bf16.msra.mxu0 0
    %284 = vmatprep.subr.bf16.mxu0 0
    %285 = vmatpush1.bf16.msra.mxu0 0
    %286 = vmatprep.subr.bf16.mxu0 0
    %287 = vmatpush1.bf16.msra.mxu0 0
    %288 = vmatprep.mubr.bf16.mxu0 0
    %289 = vmatmul.mubr.bf16.gmra.mrb[0].mxu0 %v250
    %v290 = vpop.f32.mrb[0].mxu0
    %v291 = vadd.f32 %v237, %v290
    %v292 = vpop.f32.mrb[0].mxu0
    %v293 = vpop.f32.mrb[0].mxu0
    %v294 = vpop.f32.mrb[0].mxu0
    %295 = vdwg.mxu0
    %v296 = vsel %vm217, %v291, -inf
    %297 = vmax.xlane.f32.xlu0 %v296
    %v298 = vpop.xlane.xlu0 %297
    %v299 = vsub.f32 %v291, %v298
    %v300 = vmul.f32 %v299, 1.442695
    %v301 = vpow.pop %v300
    %v302 = vsel %vm217, %v301, 0.0
    %303 = vadd.xlane.f32.xlu0 %v302
    %v304 = vpop.xlane.xlu0 %303
    %v305 = vrcp.pop %v304
    %v306 = vmul.f32 %v301, %v305
    %v307 = vpack.c.bf16 %v228, %v228
    %v308 = vld [vmem:[%s7] sm:$0xf]
    %v309 = vld [vmem:[%s7 + $0x4] sm:$0xf]
    %v310 = vpack.c.bf16 %v306, %v306
    %v311 = vld [vmem:[%s8] sm:$0xf]
    %v312 = vld [vmem:[%s8 + $0x4] sm:$0xf]
    %v315 = vunpack.c.l.b16 %v311
    %v316 = vunpack.c.l.b16 %v312
    %v317 = vpack.c.b16 %v316, %v315
    %v320 = vsel %vm217, %v310, 0
    %322 = vmatprep.subr.bf16.mxu0 0
    %323 = vmatpush1.bf16.msra.mxu0 %v317
    %324 = vmatprep.subr.bf16.mxu0 0
    %325 = vmatpush1.bf16.msra.mxu0 0
    %326 = vmatprep.subr.bf16.mxu0 0
    %327 = vmatpush1.bf16.msra.mxu0 0
    %328 = vmatprep.subr.bf16.mxu0 0
    %329 = vmatpush1.bf16.msra.mxu0 0
    %330 = vmatprep.subr.bf16.mxu0 0
    %331 = vmatpush1.bf16.msra.mxu0 0
    %332 = vmatprep.subr.bf16.mxu0 0
    %333 = vmatpush1.bf16.msra.mxu0 0
    %334 = vmatprep.subr.bf16.mxu0 0
    %335 = vmatpush1.bf16.msra.mxu0 0
    %336 = vmatprep.subr.bf16.mxu0 0
    %337 = vmatpush1.bf16.msra.mxu0 0
    %338 = vmatprep.subr.bf16.mxu0 0
    %339 = vmatpush1.bf16.msra.mxu0 0
    %340 = vmatprep.subr.bf16.mxu0 0
    %341 = vmatpush1.bf16.msra.mxu0 0
    %342 = vmatprep.subr.bf16.mxu0 0
    %343 = vmatpush1.bf16.msra.mxu0 0
    %344 = vmatprep.subr.bf16.mxu0 0
    %345 = vmatpush1.bf16.msra.mxu0 0
    %346 = vmatprep.subr.bf16.mxu0 0
    %347 = vmatpush1.bf16.msra.mxu0 0
    %348 = vmatprep.subr.bf16.mxu0 0
    %349 = vmatpush1.bf16.msra.mxu0 0
    %350 = vmatprep.subr.bf16.mxu0 0
    %351 = vmatpush1.bf16.msra.mxu0 0
    %352 = vmatprep.subr.bf16.mxu0 0
    %353 = vmatpush1.bf16.msra.mxu0 0
    %354 = vmatprep.mubr.bf16.mxu0 0
    %355 = vmatmul.mubr.bf16.gmra.mrb[0].mxu0 %v320
    %v356 = vpop.f32.mrb[0].mxu0
    %v357 = vadd.f32 0.0, %v356
    %v358 = vpop.f32.mrb[0].mxu0
    %v359 = vpop.f32.mrb[0].mxu0
    %v360 = vpop.f32.mrb[0].mxu0
    %361 = vdwg.mxu0
    %v364 = vunpack.c.l.b16 %v308
    %v365 = vunpack.c.l.b16 %v309
    %v366 = vpack.c.b16 %v365, %v364
    %v369 = vsel %vm217, %v307, 0
    %371 = vmatprep.subr.bf16.mxu0 0
    %372 = vmatpush1.bf16.msra.mxu0 %v366
    %373 = vmatprep.subr.bf16.mxu0 0
    %374 = vmatpush1.bf16.msra.mxu0 0
    %375 = vmatprep.subr.bf16.mxu0 0
    %376 = vmatpush1.bf16.msra.mxu0 0
    %377 = vmatprep.subr.bf16.mxu0 0
    %378 = vmatpush1.bf16.msra.mxu0 0
    %379 = vmatprep.subr.bf16.mxu0 0
    %380 = vmatpush1.bf16.msra.mxu0 0
    %381 = vmatprep.subr.bf16.mxu0 0
    %382 = vmatpush1.bf16.msra.mxu0 0
    %383 = vmatprep.subr.bf16.mxu0 0
    %384 = vmatpush1.bf16.msra.mxu0 0
    %385 = vmatprep.subr.bf16.mxu0 0
    %386 = vmatpush1.bf16.msra.mxu0 0
    %387 = vmatprep.subr.bf16.mxu0 0
    %388 = vmatpush1.bf16.msra.mxu0 0
    %389 = vmatprep.subr.bf16.mxu0 0
    %390 = vmatpush1.bf16.msra.mxu0 0
    %391 = vmatprep.subr.bf16.mxu0 0
    %392 = vmatpush1.bf16.msra.mxu0 0
    %393 = vmatprep.subr.bf16.mxu0 0
    %394 = vmatpush1.bf16.msra.mxu0 0
    %395 = vmatprep.subr.bf16.mxu0 0
    %396 = vmatpush1.bf16.msra.mxu0 0
    %397 = vmatprep.subr.bf16.mxu0 0
    %398 = vmatpush1.bf16.msra.mxu0 0
    %399 = vmatprep.subr.bf16.mxu0 0
    %400 = vmatpush1.bf16.msra.mxu0 0
    %401 = vmatprep.subr.bf16.mxu0 0
    %402 = vmatpush1.bf16.msra.mxu0 0
    %403 = vmatprep.mubr.bf16.mxu0 0
    %404 = vmatmul.mubr.bf16.gmra.mrb[0].mxu0 %v369
    %v405 = vpop.f32.mrb[0].mxu0
    %v406 = vadd.f32 %v357, %v405
    %v407 = vpop.f32.mrb[0].mxu0
    %v408 = vpop.f32.mrb[0].mxu0
    %v409 = vpop.f32.mrb[0].mxu0
    %410 = vdwg.mxu0
    %v411 = vld [vmem:[%s9] sm:$0x1]
    %v413 = vlaneseq
    %v414 = vshrl.u32 %v413, 7
    %v415 = vsub.s32 0, %v414
    %v416 = vrot.slane %v411, %v415
    %v418 = vadd.f32 %v406, %v416
    %v419 = vsel %vm217, %v418, -inf
    %420 = vmax.xlane.f32.xlu0 %v419
    %v421 = vpop.xlane.xlu0 %420
    %v422 = vsub.f32 %v418, %v421
    %v423 = vmul.f32 %v422, 1.442695
    %v424 = vpow.pop %v423
    %v425 = vsel %vm217, %v424, 0.0
    %426 = vadd.xlane.f32.xlu0 %v425
    %v427 = vpop.xlane.xlu0 %426
    %v428 = vrcp.pop %v427
    %v429 = vmul.f32 %v424, %v428
    %431 = vrot.lane.b32.xlu0 %v306, 16
    %v432 = vpop.permute.xlu0 %431
    %435 = vrot.lane.b32.xlu0 %v429, 32
    %v436 = vpop.permute.xlu0 %435
    %v438 = vsel %vm217, %v228, %v432
    %v439 = vsel %vm173, %v438, %v436
    %vm440 = vcmask 392192
    %v441 = vsel %vm440, %v439, 0.0
    %442 = vst [vmem:[#allocation2] sm:$0xff] %v441
    // Predicated region
    $region42: #{tpu_custom_call.1} parent=1 // pred_check
      _
    $region43: #{tpu_custom_call.1} parent=1 // pred_check_branch
      %444 = sbr.rel (0) target = $region45
    $region44: #{tpu_custom_call.1} parent=1 // pred_region
      %s446 = ssub.s32 128, 128
      %447 = vsyncadd [#allocation3], %s446
      %s449 = sshll.u32 [#allocation2], 4
      %s450 = int_to_ptr.vmem [resolvable:$true] %s449
      %452 = dma.vmem_to_hbm [thread:$0]  %s450, 128, %s10, [#allocation3]
    $region45: #{tpu_custom_call.1} parent=1 // pred_fallthru
      _
    // Predicated region
    $region46: #{tpu_custom_call.1} parent=1 // pred_check
      _
    $region47: #{tpu_custom_call.1} parent=1 // pred_check_branch
      %454 = sbr.rel (0) target = $region49
    $region48: #{tpu_custom_call.1} parent=1 // pred_region
      %455 = dma.done [#allocation3], 128
    $region49: #{tpu_custom_call.1} parent=1 // pred_fallthru
      _
    %456 = vsyncpa [#allocation3], 1

</llo_original>
